<compile_context>
chip_gen: v6e
topology: v6e:2x2x1
jax: 0.10.0
libtpu: 0.0.40
codegen_flags: <defaults>
</compile_context>

<pallas_src>
import functools

import jax
import jax.numpy as jnp
from jax.experimental import pallas as pl
from jax.experimental.pallas import tpu as pltpu


def _round_up(x, m):
    return (x + m - 1) // m * m


_ROW_TILE_TARGET = 512     # >=512-row tiles ~85% of HBM roofline
_ROW_TILE_FALLBACK = 1024  # wider rows when XW must be re-streamed (K-tiled)
_K_TILE_TARGET = 2048      # XW is VMEM-resident, so a large K tile is free


def _pick_tile(n_p, target):
    """Largest multiple of 128 that divides n_p and is <= target."""
    best = 128
    d = 128
    t = min(target, n_p)
    while d <= t:
        if n_p % d == 0:
            best = d
        d += 128
    return best


@functools.lru_cache(maxsize=None)
def _vmem_budget_bytes():
    """Generation-aware VMEM budget: ~75% of per-core physical VMEM.

    v5e/v6e: 128 MiB -> ~96 MiB; v7x: 64 MiB/TC -> ~48 MiB.
    """
    cap = 64 * 1024 * 1024
    try:
        info = pltpu.get_tpu_info()
        cap = int(getattr(info, "vmem_capacity_bytes", cap) or cap)
    except Exception:
        pass
    return min(int(cap * 0.75), 112 * 1024 * 1024)


@functools.lru_cache(maxsize=None)
def _single_buffer_ok():
    """Probe whether pipeline_mode=pl.Buffered(1) is accepted on this backend."""
    def _copy(x_ref, o_ref):
        o_ref[...] = x_ref[...]
    try:
        spec = pl.BlockSpec((8, 128), lambda i: (0, 0),
                            pipeline_mode=pl.Buffered(1))
        out = pl.pallas_call(
            _copy,
            out_shape=jax.ShapeDtypeStruct((8, 128), jnp.float32),
            grid=(1,),
            in_specs=[spec],
            out_specs=pl.BlockSpec((8, 128), lambda i: (0, 0)),
        )(jnp.zeros((8, 128), jnp.float32))
        jax.block_until_ready(out)
        return True
    except Exception:
        return False


def _const_spec(block_shape, index_map):
    """BlockSpec for a grid-invariant block: fetched once, single-buffered when
    supported (a second buffer for a constant index_map is pure VMEM waste)."""
    if _single_buffer_ok():
        return pl.BlockSpec(block_shape, index_map, pipeline_mode=pl.Buffered(1))
    return pl.BlockSpec(block_shape, index_map)


# --------------------------------------------------------------------------
# Stage 1: XW = X @ W   (small matmul, X rows tiled, W resident)
# --------------------------------------------------------------------------
def _xw_kernel(x_ref, w_ref, o_ref):
    o_ref[...] = jnp.dot(
        x_ref[...], w_ref[...], preferred_element_type=jnp.float32
    ).astype(o_ref.dtype)


def dense_xw(x_bf, w_bf, *, tm):
    n_p, f_p = x_bf.shape
    h_p = w_bf.shape[1]
    return pl.pallas_call(
        _xw_kernel,
        out_shape=jax.ShapeDtypeStruct((n_p, h_p), jnp.bfloat16),
        grid_spec=pltpu.PrefetchScalarGridSpec(
            num_scalar_prefetch=0,
            grid=(n_p // tm,),
            in_specs=[
                pl.BlockSpec((tm, f_p), lambda i: (i, 0)),
                _const_spec((f_p, h_p), lambda i: (0, 0)),   # W resident
            ],
            out_specs=pl.BlockSpec((tm, h_p), lambda i: (i, 0)),
        ),
        compiler_params=pltpu.CompilerParams(
            dimension_semantics=("parallel",),
            vmem_limit_bytes=_vmem_budget_bytes(),
        ),
        cost_estimate=pl.CostEstimate(
            flops=2 * n_p * f_p * h_p,
            transcendentals=0,
            bytes_accessed=2 * (n_p * f_p + f_p * h_p + n_p * h_p),
        ),
    )(x_bf, w_bf)


# --------------------------------------------------------------------------
# Stage 2: H = A_hat @ XW + b [+ ReLU]
#   grid = (row tiles of A, K-reduction tiles).  XW either stays resident in
#   VMEM (fetched once, single-buffered) or, when too big for the per-core
#   VMEM budget, is streamed as K-tiles alongside A.  f32 accumulator scratch
#   with pl.when init/finalize (bias + ReLU applied once).
# --------------------------------------------------------------------------
def _spmm_kernel(a_ref, xw_ref, b_ref, o_ref, acc_ref, *, tk, apply_relu,
                 xw_resident):
    k = pl.program_id(1)

    @pl.when(k == 0)
    def _():
        acc_ref[...] = jnp.zeros_like(acc_ref)

    if xw_resident:
        # Static-stride slice of the VMEM-resident XW.  If bundle dumps show a
        # per-step VMEM copy here, use the K-tiled delivery (xw_resident=False).
        k_off = pl.multiple_of(k * tk, tk)
        xw_tile = xw_ref[pl.ds(k_off, tk), :]
    else:
        xw_tile = xw_ref[...]

    acc_ref[...] += jnp.dot(a_ref[...], xw_tile,
                            preferred_element_type=jnp.float32)

    @pl.when(k == pl.num_programs(1) - 1)
    def _():
        h = acc_ref[...] + b_ref[...]
        if apply_relu:
            h = jnp.maximum(h, 0.0)
        o_ref[...] = h.astype(o_ref.dtype)


def spmm_bias_act(a_bf, xw_bf, b, *, tm, tk, apply_relu, out_dtype, xw_resident):
    m_p = a_bf.shape[0]                 # rows of the adjacency slab streamed
    n_p, h_p = xw_bf.shape
    kernel = functools.partial(_spmm_kernel, tk=tk, apply_relu=apply_relu,
                               xw_resident=xw_resident)
    if xw_resident:
        xw_spec = _const_spec((n_p, h_p), lambda i, k: (0, 0))   # resident
    else:
        xw_spec = pl.BlockSpec((tk, h_p), lambda i, k: (k, 0))   # K-tiled stream
    out_bytes = jnp.dtype(out_dtype).itemsize
    return pl.pallas_call(
        kernel,
        out_shape=jax.ShapeDtypeStruct((m_p, h_p), out_dtype),
        grid_spec=pltpu.PrefetchScalarGridSpec(
            num_scalar_prefetch=0,
            grid=(m_p // tm, n_p // tk),
            in_specs=[
                pl.BlockSpec((tm, tk), lambda i, k: (i, k)),     # A_hat (bf16)
                xw_spec,                                          # XW (bf16)
                _const_spec((1, h_p), lambda i, k: (0, 0)),       # bias (f32)
            ],
            out_specs=pl.BlockSpec((tm, h_p), lambda i, k: (i, 0)),
            scratch_shapes=[pltpu.VMEM((tm, h_p), jnp.float32)],
        ),
        compiler_params=pltpu.CompilerParams(
            # Row axis "parallel" -> shards across v7x's 2 TensorCores; each TC
            # holds its own resident XW copy (budgeted per-TC above).
            dimension_semantics=("parallel", "arbitrary"),
            vmem_limit_bytes=_vmem_budget_bytes(),
        ),
        cost_estimate=pl.CostEstimate(
            flops=2 * m_p * n_p * h_p,
            transcendentals=0,
            bytes_accessed=(2 * m_p * n_p + 2 * n_p * h_p
                            + out_bytes * m_p * h_p + 4 * h_p),
        ),
    )(a_bf, xw_bf, b)


# --------------------------------------------------------------------------
# Glue (plain JAX, jitted): dense normalized adjacency built directly in bf16
# (no f32 N x N intermediate), zero-padded to the tiled size.  Diagonal forced
# to exactly 1 before normalization so pre-existing self-loops are deduped.
# TODO(synk): for realistic sparse graphs, replace the dense O(N^2) adjacency
# with a gather-based SpMM (scalar-prefetched neighbor lists) instead.
# --------------------------------------------------------------------------
@functools.partial(jax.jit, static_argnames=("num_nodes", "num_nodes_padded"))
def build_norm_adj(edge_index, *, num_nodes, num_nodes_padded):
    src, dst = edge_index[0], edge_index[1]
    a = jnp.zeros((num_nodes, num_nodes), jnp.bfloat16)
    a = a.at[src, dst].set(1.0)
    a = a.at[dst, src].set(1.0)                         # undirected
    diag = jnp.arange(num_nodes)
    a = a.at[diag, diag].set(1.0)                       # exactly one self-loop
    deg = a.sum(axis=1, dtype=jnp.float32)              # exact: entries are 0/1
    d_inv_sqrt = jnp.where(deg > 0, jax.lax.rsqrt(deg), 0.0).astype(jnp.bfloat16)
    a_hat = a * d_inv_sqrt[:, None] * d_inv_sqrt[None, :]
    pad = num_nodes_padded - num_nodes
    if pad:
        a_hat = jnp.pad(a_hat, ((0, pad), (0, pad)))
    return a_hat


@functools.partial(jax.jit, static_argnames=("n_p", "tm", "tk", "xw_resident"))
def _gcn2_full(a_hat, x, w1_p, b1_p, w2_p, b2_p, *, n_p, tm, tk, xw_resident):
    n, f = x.shape
    f_p = w1_p.shape[0]
    x_p = (jnp.zeros((n_p, f_p), jnp.float32)
           .at[:n, :f].set(x).astype(jnp.bfloat16))
    xw1 = dense_xw(x_p, w1_p, tm=tm)
    h1 = spmm_bias_act(a_hat, xw1, b1_p, tm=tm, tk=tk, apply_relu=True,
                       out_dtype=jnp.bfloat16, xw_resident=xw_resident)
    xw2 = dense_xw(h1, w2_p, tm=tm)
    # Final output stays f32 (O(N*H) writeback is negligible vs O(N^2) A_hat).
    return spmm_bias_act(a_hat, xw2, b2_p, tm=tm, tk=tk, apply_relu=False,
                         out_dtype=jnp.float32, xw_resident=xw_resident)


@functools.partial(jax.jit,
                   static_argnames=("n_p", "tm", "tk", "tm_rows", "xw_resident"))
def _gcn2_rows(a_hat, idx_p, x, w1_p, b1_p, w2_p, b2_p, *,
               n_p, tm, tk, tm_rows, xw_resident):
    n, f = x.shape
    f_p = w1_p.shape[0]
    x_p = (jnp.zeros((n_p, f_p), jnp.float32)
           .at[:n, :f].set(x).astype(jnp.bfloat16))
    xw1 = dense_xw(x_p, w1_p, tm=tm)
    h1 = spmm_bias_act(a_hat, xw1, b1_p, tm=tm, tk=tk, apply_relu=True,
                       out_dtype=jnp.bfloat16, xw_resident=xw_resident)
    xw2 = dense_xw(h1, w2_p, tm=tm)
    # hidden[index] == A_hat[index] @ XW2 + b2: gather the requested rows once
    # so layer 2 streams only O(|index| * N) of A_hat instead of O(N^2).
    a_rows = a_hat[idx_p]
    return spmm_bias_act(a_rows, xw2, b2_p, tm=tm_rows, tk=tk, apply_relu=False,
                         out_dtype=jnp.float32, xw_resident=xw_resident)


class GraphCFPallas:
    """Pallas port of GraphCF.forward; the injected gnn is a 2-layer GCN."""

    def __init__(self, num_features, hidden_size, num_class, key):
        self.num_features = num_features
        self.hidden_size = hidden_size
        self.num_class = num_class
        self.f_p = _round_up(num_features, 128)   # pad channels to lane width
        self.h_p = _round_up(hidden_size, 128)

        k1, k2, k3, k4 = jax.random.split(key, 4)
        s1 = 1.0 / jnp.sqrt(jnp.float32(num_features))
        s2 = 1.0 / jnp.sqrt(jnp.float32(hidden_size))
        # Deterministic Kaiming-uniform-style init (like torch Linear default).
        self.w1 = jax.random.uniform(k1, (num_features, hidden_size), jnp.float32, -s1, s1)
        self.b1 = jax.random.uniform(k2, (hidden_size,), jnp.float32, -s1, s1)
        self.w2 = jax.random.uniform(k3, (hidden_size, hidden_size), jnp.float32, -s2, s2)
        self.b2 = jax.random.uniform(k4, (hidden_size,), jnp.float32, -s2, s2)

        # Padded, kernel-ready parameters (weights bf16, biases f32).
        self.w1_p = (jnp.zeros((self.f_p, self.h_p), jnp.float32)
                     .at[:num_features, :hidden_size].set(self.w1)
                     .astype(jnp.bfloat16))
        self.b1_p = jnp.zeros((1, self.h_p), jnp.float32).at[0, :hidden_size].set(self.b1)
        self.w2_p = (jnp.zeros((self.h_p, self.h_p), jnp.float32)
                     .at[:hidden_size, :hidden_size].set(self.w2)
                     .astype(jnp.bfloat16))
        self.b2_p = jnp.zeros((1, self.h_p), jnp.float32).at[0, :hidden_size].set(self.b2)

        self._adj_cache = None   # (edge_index obj, (n, n_p), bf16 A_hat)

    def _get_adj(self, edge_index, n, n_p):
        c = self._adj_cache
        if c is not None and c[0] is edge_index and c[1] == (n, n_p):
            return c[2]
        a_hat = build_norm_adj(edge_index, num_nodes=n, num_nodes_padded=n_p)
        self._adj_cache = (edge_index, (n, n_p), a_hat)
        return a_hat

    def forward(self, x, edge_index, index=None):
        n = x.shape[0]
        # Pad N only to the 128-lane boundary (bounds N^2 padding waste to
        # <~25% worst case); tiles are chosen as divisors of the padded N.
        n_p = _round_up(n, 128)
        tm = _pick_tile(n_p, _ROW_TILE_TARGET)
        tk = _pick_tile(n_p, _K_TILE_TARGET)

        # VMEM-aware XW delivery: resident (fetched once) when it fits under
        # ~40% of the per-core VMEM budget (v5e/v6e 128 MiB, v7x 64 MiB/TC);
        # otherwise stream XW K-tiles and widen the row tile to amortize it.
        xw_bufs = 1 if _single_buffer_ok() else 2
        xw_resident = n_p * self.h_p * 2 * xw_bufs <= int(0.4 * _vmem_budget_bytes())
        if not xw_resident:
            tm = _pick_tile(n_p, _ROW_TILE_FALLBACK)

        a_hat = self._get_adj(edge_index, n, n_p)

        gathered = index is not None and 2 * int(index.shape[0]) <= n
        if not gathered:
            hidden = _gcn2_full(a_hat, x, self.w1_p, self.b1_p, self.w2_p,
                                self.b2_p, n_p=n_p, tm=tm, tk=tk,
                                xw_resident=xw_resident)
            hidden = hidden[:n, :self.hidden_size]
            return hidden if index is None else hidden[index]

        m = int(index.shape[0])
        m_p = _round_up(m, 128)
        tm_rows = _pick_tile(m_p, _ROW_TILE_TARGET)
        idx_p = jnp.zeros((m_p,), jnp.int32).at[:m].set(index.astype(jnp.int32))
        z = _gcn2_rows(a_hat, idx_p, x, self.w1_p, self.b1_p, self.w2_p,
                       self.b2_p, n_p=n_p, tm=tm, tk=tk, tm_rows=tm_rows,
                       xw_resident=xw_resident)
        return z[:m, :self.hidden_size]


if __name__ == "__main__":
    key = jax.random.PRNGKey(0)
    k_feat, k_edge, k_param, k_idx = jax.random.split(key, 4)

    num_nodes = 16
    num_features = 4
    hidden_size = 32
    num_class = 3
    num_edges = 24

    x = jax.random.normal(k_feat, (num_nodes, num_features), jnp.float32)
    edge_index = jax.random.randint(k_edge, (2, num_edges), 0, num_nodes, jnp.int32)
    index = jax.random.permutation(k_idx, num_nodes)[:8]          # gathered-row path
    index_all = jnp.arange(num_nodes, dtype=jnp.int32)            # full path + gather

    model = GraphCFPallas(num_features, hidden_size, num_class, k_param)

    hidden = model.forward(x, edge_index)                 # index is None -> full hidden
    z = model.forward(x, edge_index, index=index)         # few rows -> gathered A_hat rows
    z_all = model.forward(x, edge_index, index=index_all) # many rows -> full then gather
    jax.block_until_ready(hidden)
    jax.block_until_ready(z)
    jax.block_until_ready(z_all)

    # Pure-JAX reference mirroring the kernel's bf16 casts (f32 accumulation).
    a_ref = build_norm_adj(edge_index, num_nodes=num_nodes,
                           num_nodes_padded=num_nodes).astype(jnp.float32)

    def bf(v):
        return v.astype(jnp.bfloat16).astype(jnp.float32)

    xw1_ref = bf(jnp.dot(bf(x), bf(model.w1)))
    h1_ref = bf(jnp.maximum(jnp.dot(a_ref, xw1_ref) + model.b1, 0.0))
    xw2_ref = bf(jnp.dot(h1_ref, bf(model.w2)))
    ref = jnp.dot(a_ref, xw2_ref) + model.b2

    assert hidden.shape == (num_nodes, hidden_size)
    assert z.shape == (8, hidden_size)
    assert z_all.shape == (num_nodes, hidden_size)
    assert jnp.allclose(hidden, ref, atol=1e-2, rtol=1e-2)
    assert jnp.allclose(z, ref[index], atol=1e-2, rtol=1e-2)
    assert jnp.allclose(z_all, ref, atol=1e-2, rtol=1e-2)

    print("KERNEL_OK")
</pallas_src>

<mosaic_0001>
module attributes {stable_mosaic.version = 11 : i64} {
  func.func @_copy(%arg0: i32, %arg1: memref<8x128xf32, #tpu.memory_space<vmem>>, %arg2: memref<8x128xf32, #tpu.memory_space<vmem>>) attributes {dimension_semantics = [#tpu.dimension_semantics<arbitrary>], iteration_bounds = array<i64: 1>, scalar_prefetch = 0 : i64, scratch_operands = 0 : i64, tpu.core_type = #tpu.core_type<tc>, window_params = [{pipeline_mode = #tpu.pipeline_mode<synchronous>, transform_indices = @transform_0, window_bounds = array<i64: 8, 128>}, {pipeline_mode = #tpu.pipeline_mode<synchronous>, transform_indices = @transform_1, window_bounds = array<i64: 8, 128>}]} {
    %c0 = arith.constant 0 : index
    %c0_0 = arith.constant 0 : index
    %0 = vector.load %arg1[%c0, %c0_0] : memref<8x128xf32, #tpu.memory_space<vmem>>, vector<8x128xf32>
    %c0_1 = arith.constant 0 : index
    %c0_2 = arith.constant 0 : index
    %1 = vector.load %arg2[%c0_1, %c0_2] : memref<8x128xf32, #tpu.memory_space<vmem>>, vector<8x128xf32>
    tpu.vector_store %arg2[%c0_1, %c0_2], %0 {strides = array<i32>} : memref<8x128xf32, #tpu.memory_space<vmem>>, vector<8x128xf32>,
    return
  }
  func.func @transform_0(%arg0: i32) -> (i32, i32) {
    %c0_i32 = arith.constant 0 : i32
    %c0_i32_0 = arith.constant 0 : i32
    %c0_i32_1 = arith.constant 0 : i32
    return %c0_i32, %c0_i32_0 : i32, i32
  }
  func.func @transform_1(%arg0: i32) -> (i32, i32) {
    %c0_i32 = arith.constant 0 : i32
    %c0_i32_0 = arith.constant 0 : i32
    %c0_i32_1 = arith.constant 0 : i32
    return %c0_i32, %c0_i32_0 : i32, i32
  }
}

</mosaic_0001>

<llo_original>
// kernel: tpu_custom_call.1
$region0: #{tpu_custom_call.1}
  #allocation0 [shape = 'u32[]', space=smem, size = 0x4, offset = 0x4, fixed_abs, tag = 'smem constant byte address 0x4 - core index']
  #allocation1 [shape = 'u32[144,128]{1,0:T(1,128)}', space=vmem, size = 0x12000, scoped, tag = 'internal scratch']
  %s0 = inlined_call_operand.hbm [shape: f32[8,128], index: 0, kind: input, shape index: {}]
  %s1 = inlined_call_operand.hbm [shape: f32[8,128], index: 1, kind: output, shape index: {}]
  %s2 = sld [smem:[#allocation0]]
  $region18: #{tpu_custom_call.1} parent=0
    _
  %s4 = ssub.s32 1, %s2
  %s5 = scalar_select 0, %s4, %s2
  $region1: #{tpu_custom_call.1} parent=0
    #allocation2 [shape = 'u8[4096]{0}', space=vmem, size = 0x1000, scoped, tag = 'input window, operand 0, single buffered']
    #allocation3 [shape = 's32[1]{0}', space=sflag, size = 0x4, scoped, tag = 'scoped memory for tpu_custom_call.1']
    #allocation4 [shape = 's32[1]{0}', space=sflag, size = 0x4, scoped, tag = 'scoped memory for tpu_custom_call.1']
    #allocation5 [shape = 'u8[4096]{0}', space=vmem, size = 0x1000, scoped, tag = 'output window, operand 0, single buffered']
    %6 = vsyncpa [#allocation3], 0
    %7 = vsyncpa [#allocation4], 0
    // Predicated region
    $region2: #{tpu_custom_call.1} parent=1 // pred_check
      _
    $region3: #{tpu_custom_call.1} parent=1 // pred_check_branch
      %9 = sbr.rel (0) target = $region5
    $region4: #{tpu_custom_call.1} parent=1 // pred_region
      %s11 = ssub.s32 128, 128
      %12 = vsyncadd [#allocation3], %s11
      %s14 = sshll.u32 [#allocation2], 4
      %s15 = int_to_ptr.vmem [resolvable:$true] %s14
      %17 = dma.hbm_to_vmem [thread:$0]  %s0, 128, %s15, [#allocation3]
    $region5: #{tpu_custom_call.1} parent=1 // pred_fallthru
      _
    // Predicated region
    $region6: #{tpu_custom_call.1} parent=1 // pred_check
      _
    $region7: #{tpu_custom_call.1} parent=1 // pred_check_branch
      %19 = sbr.rel (0) target = $region9
    $region8: #{tpu_custom_call.1} parent=1 // pred_region
      %20 = dma.done [#allocation3], 128
    $region9: #{tpu_custom_call.1} parent=1 // pred_fallthru
      _
    %v21 = vld [vmem:[#allocation2] sm:$0xff]
    %22 = vst [vmem:[#allocation5] sm:$0xff] %v21
    // Predicated region
    $region10: #{tpu_custom_call.1} parent=1 // pred_check
      _
    $region11: #{tpu_custom_call.1} parent=1 // pred_check_branch
      %24 = sbr.rel (0) target = $region13
    $region12: #{tpu_custom_call.1} parent=1 // pred_region
      %s26 = ssub.s32 128, 128
      %27 = vsyncadd [#allocation4], %s26
      %s29 = sshll.u32 [#allocation5], 4
      %s30 = int_to_ptr.vmem [resolvable:$true] %s29
      %32 = dma.vmem_to_hbm [thread:$0]  %s30, 128, %s1, [#allocation4]
    $region13: #{tpu_custom_call.1} parent=1 // pred_fallthru
      _
    // Predicated region
    $region14: #{tpu_custom_call.1} parent=1 // pred_check
      _
    $region15: #{tpu_custom_call.1} parent=1 // pred_check_branch
      %34 = sbr.rel (0) target = $region17
    $region16: #{tpu_custom_call.1} parent=1 // pred_region
      %35 = dma.done [#allocation4], 128
    $region17: #{tpu_custom_call.1} parent=1 // pred_fallthru
      _
    %36 = vsyncpa [#allocation3], 1
    %37 = vsyncpa [#allocation4], 1

</llo_original>
